<compile_context>
chip_gen: v7x
topology: tpu7x:2x2x1
jax: 0.10.0
libtpu: 0.0.40
codegen_flags: <defaults>
</compile_context>

<pallas_src>
import jax
import jax.numpy as jnp
from jax.experimental import pallas as pl
from jax.experimental.pallas import tpu as pltpu


def _round_up(x, m):
    return (x + m - 1) // m * m


def _residual_mlp_kernel(x_ref, w_in_ref, w_hid_ref, w_out_ref, b_ref, o_ref):
    """Fused forward pass for one batch tile. All matmuls hit the MXU in bf16/f32-acc."""
    H = w_hid_ref.shape[-1]          # padded hidden width (128)
    n_out_p = w_out_ref.shape[-1]    # padded output width (128)
    b = b_ref[...]                   # [6, P] f32 bias slab (tiny)

    def mm(a_bf16, w_bf16):
        return jnp.dot(a_bf16, w_bf16, preferred_element_type=jnp.float32)

    # Input projection + ReLU (x tile is already bf16)
    h = mm(x_ref[...], w_in_ref[...]) + b[0:1, :H]
    h = jnp.maximum(h, 0.0)

    # Residual block 1: h + Linear(ReLU(Linear(h)))
    # TODO(synk): dropout is identity at inference; training-mode dropout not implemented.
    t = mm(h.astype(jnp.bfloat16), w_hid_ref[0]) + b[1:2, :H]
    t = jnp.maximum(t, 0.0)
    t = mm(t.astype(jnp.bfloat16), w_hid_ref[1]) + b[2:3, :H]
    h = h + t

    # Residual block 2
    t = mm(h.astype(jnp.bfloat16), w_hid_ref[2]) + b[3:4, :H]
    t = jnp.maximum(t, 0.0)
    t = mm(t.astype(jnp.bfloat16), w_hid_ref[3]) + b[4:5, :H]
    h = h + t

    # Output projection (lane-dense 128-wide slab; wrapper slices to n_out)
    out = mm(h.astype(jnp.bfloat16), w_out_ref[...]) + b[5:6, :n_out_p]
    o_ref[...] = out.astype(o_ref.dtype)


def pack_params(params, n_hidden_pad=128):
    """Zero-pad all feature dims to multiples of 128, stack weights, cast to bf16.

    Zero padding is exact through bias-add, ReLU and residual adds (padded lanes stay 0).
    """
    H = _round_up(max(params["w0"].shape[1], n_hidden_pad), 128)
    n_in = params["w0"].shape[0]
    n_out = params["wout"].shape[1]
    n_in_p = _round_up(n_in, 128)
    n_out_p = _round_up(n_out, 128)
    P = max(H, n_out_p)

    def pad2(w, r, c):
        return jnp.pad(w, ((0, r - w.shape[0]), (0, c - w.shape[1])))

    w_in = pad2(params["w0"], n_in_p, H).astype(jnp.bfloat16)
    w_hid = jnp.stack([
        pad2(params["w1a"], H, H), pad2(params["w1b"], H, H),
        pad2(params["w2a"], H, H), pad2(params["w2b"], H, H),
    ]).astype(jnp.bfloat16)
    w_out = pad2(params["wout"], H, n_out_p).astype(jnp.bfloat16)
    biases = jnp.concatenate([
        pad2(params["b0"], 1, P), pad2(params["b1a"], 1, P), pad2(params["b1b"], 1, P),
        pad2(params["b2a"], 1, P), pad2(params["b2b"], 1, P), pad2(params["bout"], 1, P),
    ], axis=0).astype(jnp.float32)

    return dict(w_in=w_in, w_hid=w_hid, w_out=w_out, biases=biases,
                n_in=n_in, n_out=n_out,
                n_in_pad=n_in_p, n_out_pad=n_out_p, n_hidden_pad=H)


def residual_mlp_pallas(x, packed, *, batch_tile=256):
    """x: [B, n_in] float32.  packed: output of pack_params()."""
    B, n_in = x.shape
    assert n_in == packed["n_in"]
    H = packed["n_hidden_pad"]
    n_in_p = packed["n_in_pad"]
    n_out_p = packed["n_out_pad"]
    n_out = packed["n_out"]
    P = packed["biases"].shape[1]

    # Large, 16-aligned batch tile (bf16 min sublane tile is 16); don't over-pad tiny B.
    # For v7x keep B/bt >= 2 when possible so both TensorCores get work.
    bt = min(batch_tile, _round_up(B, 16))
    bt = _round_up(bt, 16)
    Bp = _round_up(B, bt)

    x_p = x
    if (Bp, n_in_p) != (B, n_in):
        x_p = jnp.pad(x, ((0, Bp - B), (0, n_in_p - n_in)))
    x_p = x_p.astype(jnp.bfloat16)

    flops = 2 * Bp * (n_in_p * H + 4 * H * H + H * n_out_p)
    bytes_accessed = (
        Bp * n_in_p * 2                               # x (bf16)
        + (n_in_p * H + 4 * H * H + H * n_out_p) * 2  # weights (bf16)
        + 6 * P * 4                                   # biases (f32)
        + Bp * n_out_p * 4                            # out (f32)
    )

    grid_spec = pltpu.PrefetchScalarGridSpec(
        num_scalar_prefetch=0,
        grid=(Bp // bt,),
        in_specs=[
            pl.BlockSpec((bt, n_in_p), lambda i: (i, 0)),      # x tile (streams)
            pl.BlockSpec((n_in_p, H), lambda i: (0, 0)),       # w_in   (resident)
            pl.BlockSpec((4, H, H), lambda i: (0, 0, 0)),      # w_hid  (resident)
            pl.BlockSpec((H, n_out_p), lambda i: (0, 0)),      # w_out  (resident)
            pl.BlockSpec((6, P), lambda i: (0, 0)),            # biases (resident)
        ],
        out_specs=pl.BlockSpec((bt, n_out_p), lambda i: (i, 0)),
    )

    out_p = pl.pallas_call(
        _residual_mlp_kernel,
        out_shape=jax.ShapeDtypeStruct((Bp, n_out_p), jnp.float32),
        grid_spec=grid_spec,
        compiler_params=pltpu.CompilerParams(
            dimension_semantics=("parallel",)),
        cost_estimate=pl.CostEstimate(
            flops=flops, transcendentals=0, bytes_accessed=bytes_accessed),
    )(x_p, packed["w_in"], packed["w_hid"], packed["w_out"], packed["biases"])

    return out_p[:B, :n_out]


def init_params(key, n_in, n_out, n_hidden=64):
    """Deterministic PyTorch-style uniform(-1/sqrt(fan_in), 1/sqrt(fan_in)) init.

    Weights are stored [in_features, out_features]; biases are [1, out_features].
    """
    def linear(k, fan_in, fan_out):
        kw, kb = jax.random.split(k)
        bound = 1.0 / jnp.sqrt(fan_in)
        w = jax.random.uniform(kw, (fan_in, fan_out), jnp.float32, -bound, bound)
        b = jax.random.uniform(kb, (1, fan_out), jnp.float32, -bound, bound)
        return w, b

    keys = jax.random.split(key, 6)
    params = {}
    params["w0"], params["b0"] = linear(keys[0], n_in, n_hidden)
    params["w1a"], params["b1a"] = linear(keys[1], n_hidden, n_hidden)
    params["w1b"], params["b1b"] = linear(keys[2], n_hidden, n_hidden)
    params["w2a"], params["b2a"] = linear(keys[3], n_hidden, n_hidden)
    params["w2b"], params["b2b"] = linear(keys[4], n_hidden, n_hidden)
    params["wout"], params["bout"] = linear(keys[5], n_hidden, n_out)
    return params


def residual_mlp_ref(x, p):
    """Pure-JAX f32 reference (eval mode: dropout = identity)."""
    h = jnp.maximum(x @ p["w0"] + p["b0"], 0.0)
    t = jnp.maximum(h @ p["w1a"] + p["b1a"], 0.0) @ p["w1b"] + p["b1b"]
    h = h + t
    t = jnp.maximum(h @ p["w2a"] + p["b2a"], 0.0) @ p["w2b"] + p["b2b"]
    h = h + t
    return h @ p["wout"] + p["bout"]


if __name__ == "__main__":
    n_in, n_out, n_hidden = 16, 8, 64
    batch = 32

    key = jax.random.PRNGKey(0)
    k_x, k_p = jax.random.split(key)
    x = jax.random.normal(k_x, (batch, n_in), jnp.float32)
    params = init_params(k_p, n_in, n_out, n_hidden)
    packed = pack_params(params)

    out = residual_mlp_pallas(x, packed, batch_tile=256)
    out = jax.block_until_ready(out)

    ref = residual_mlp_ref(x, params)
    assert out.shape == (batch, n_out)
    # bf16 MXU inputs (f32 accumulation) vs pure-f32 reference -> loosened tolerance.
    assert jnp.allclose(out, ref, atol=5e-2, rtol=5e-2), (
        f"mismatch vs JAX reference, max abs err = {jnp.max(jnp.abs(out - ref))}")

    print("KERNEL_OK")
</pallas_src>

<mosaic_0001>
module attributes {stable_mosaic.version = 11 : i64} {
  func.func @_residual_mlp_kernel(%arg0: i32, %arg1: memref<32x128xbf16, #tpu.memory_space<vmem>>, %arg2: memref<128x128xbf16, #tpu.memory_space<vmem>>, %arg3: memref<4x128x128xbf16, #tpu.memory_space<vmem>>, %arg4: memref<128x128xbf16, #tpu.memory_space<vmem>>, %arg5: memref<6x128xf32, #tpu.memory_space<vmem>>, %arg6: memref<32x128xf32, #tpu.memory_space<vmem>>) attributes {dimension_semantics = [#tpu.dimension_semantics<parallel>], iteration_bounds = array<i64: 1>, scalar_prefetch = 0 : i64, scratch_operands = 0 : i64, tpu.core_type = #tpu.core_type<tc>, window_params = [{transform_indices = @transform_0, window_bounds = array<i64: 32, 128>}, {pipeline_mode = #tpu.pipeline_mode<synchronous>, transform_indices = @transform_1, window_bounds = array<i64: 128, 128>}, {pipeline_mode = #tpu.pipeline_mode<synchronous>, transform_indices = @transform_2, window_bounds = array<i64: 4, 128, 128>}, {pipeline_mode = #tpu.pipeline_mode<synchronous>, transform_indices = @transform_3, window_bounds = array<i64: 128, 128>}, {pipeline_mode = #tpu.pipeline_mode<synchronous>, transform_indices = @transform_4, window_bounds = array<i64: 6, 128>}, {transform_indices = @transform_5, window_bounds = array<i64: 32, 128>}]} {
    %c0 = arith.constant 0 : index
    %c0_0 = arith.constant 0 : index
    %0 = vector.load %arg5[%c0, %c0_0] : memref<6x128xf32, #tpu.memory_space<vmem>>, vector<6x128xf32>
    %c0_1 = arith.constant 0 : index
    %c0_2 = arith.constant 0 : index
    %1 = vector.load %arg1[%c0_1, %c0_2] : memref<32x128xbf16, #tpu.memory_space<vmem>>, vector<32x128xbf16>
    %c0_3 = arith.constant 0 : index
    %c0_4 = arith.constant 0 : index
    %2 = vector.load %arg2[%c0_3, %c0_4] : memref<128x128xbf16, #tpu.memory_space<vmem>>, vector<128x128xbf16>
    %cst = arith.constant dense<0.000000e+00> : vector<32x128xf32>
    %3 = tpu.matmul %1, %2, %cst {dimension_numbers = #tpu.dot_dimension_numbers<[1], [0], [0], [1], [0, 0, 1, 1], [], []>} : vector<32x128xbf16>, vector<128x128xbf16>, vector<32x128xf32> -> vector<32x128xf32>
    %4 = vector.extract_strided_slice %0 {offsets = [0, 0], sizes = [1, 128], strides = [1, 1]} : vector<6x128xf32> to vector<1x128xf32>
    %5 = vector.broadcast %4 : vector<1x128xf32> to vector<32x128xf32>
    %6 = arith.addf %3, %5 : vector<32x128xf32>
    %cst_5 = arith.constant 0.000000e+00 : f32
    %7 = vector.broadcast %cst_5 : f32 to vector<32x128xf32>
    %8 = arith.maximumf %6, %7 : vector<32x128xf32>
    %9 = arith.truncf %8 : vector<32x128xf32> to vector<32x128xbf16>
    %c0_6 = arith.constant 0 : index
    %c0_7 = arith.constant 0 : index
    %c0_8 = arith.constant 0 : index
    %10 = vector.load %arg3[%c0_6, %c0_7, %c0_8] : memref<4x128x128xbf16, #tpu.memory_space<vmem>>, vector<1x128x128xbf16>
    %11 = vector.shape_cast %10 : vector<1x128x128xbf16> to vector<128x128xbf16>
    %cst_9 = arith.constant dense<0.000000e+00> : vector<32x128xf32>
    %12 = tpu.matmul %9, %11, %cst_9 {dimension_numbers = #tpu.dot_dimension_numbers<[1], [0], [0], [1], [0, 0, 1, 1], [], []>} : vector<32x128xbf16>, vector<128x128xbf16>, vector<32x128xf32> -> vector<32x128xf32>
    %13 = vector.extract_strided_slice %0 {offsets = [1, 0], sizes = [1, 128], strides = [1, 1]} : vector<6x128xf32> to vector<1x128xf32>
    %14 = vector.broadcast %13 : vector<1x128xf32> to vector<32x128xf32>
    %15 = arith.addf %12, %14 : vector<32x128xf32>
    %cst_10 = arith.constant 0.000000e+00 : f32
    %16 = vector.broadcast %cst_10 : f32 to vector<32x128xf32>
    %17 = arith.maximumf %15, %16 : vector<32x128xf32>
    %18 = arith.truncf %17 : vector<32x128xf32> to vector<32x128xbf16>
    %c1 = arith.constant 1 : index
    %c0_11 = arith.constant 0 : index
    %c0_12 = arith.constant 0 : index
    %19 = vector.load %arg3[%c1, %c0_11, %c0_12] : memref<4x128x128xbf16, #tpu.memory_space<vmem>>, vector<1x128x128xbf16>
    %20 = vector.shape_cast %19 : vector<1x128x128xbf16> to vector<128x128xbf16>
    %cst_13 = arith.constant dense<0.000000e+00> : vector<32x128xf32>
    %21 = tpu.matmul %18, %20, %cst_13 {dimension_numbers = #tpu.dot_dimension_numbers<[1], [0], [0], [1], [0, 0, 1, 1], [], []>} : vector<32x128xbf16>, vector<128x128xbf16>, vector<32x128xf32> -> vector<32x128xf32>
    %22 = vector.extract_strided_slice %0 {offsets = [2, 0], sizes = [1, 128], strides = [1, 1]} : vector<6x128xf32> to vector<1x128xf32>
    %23 = vector.broadcast %22 : vector<1x128xf32> to vector<32x128xf32>
    %24 = arith.addf %21, %23 : vector<32x128xf32>
    %25 = arith.addf %8, %24 : vector<32x128xf32>
    %26 = arith.truncf %25 : vector<32x128xf32> to vector<32x128xbf16>
    %c2 = arith.constant 2 : index
    %c0_14 = arith.constant 0 : index
    %c0_15 = arith.constant 0 : index
    %27 = vector.load %arg3[%c2, %c0_14, %c0_15] : memref<4x128x128xbf16, #tpu.memory_space<vmem>>, vector<1x128x128xbf16>
    %28 = vector.shape_cast %27 : vector<1x128x128xbf16> to vector<128x128xbf16>
    %cst_16 = arith.constant dense<0.000000e+00> : vector<32x128xf32>
    %29 = tpu.matmul %26, %28, %cst_16 {dimension_numbers = #tpu.dot_dimension_numbers<[1], [0], [0], [1], [0, 0, 1, 1], [], []>} : vector<32x128xbf16>, vector<128x128xbf16>, vector<32x128xf32> -> vector<32x128xf32>
    %30 = vector.extract_strided_slice %0 {offsets = [3, 0], sizes = [1, 128], strides = [1, 1]} : vector<6x128xf32> to vector<1x128xf32>
    %31 = vector.broadcast %30 : vector<1x128xf32> to vector<32x128xf32>
    %32 = arith.addf %29, %31 : vector<32x128xf32>
    %cst_17 = arith.constant 0.000000e+00 : f32
    %33 = vector.broadcast %cst_17 : f32 to vector<32x128xf32>
    %34 = arith.maximumf %32, %33 : vector<32x128xf32>
    %35 = arith.truncf %34 : vector<32x128xf32> to vector<32x128xbf16>
    %c3 = arith.constant 3 : index
    %c0_18 = arith.constant 0 : index
    %c0_19 = arith.constant 0 : index
    %36 = vector.load %arg3[%c3, %c0_18, %c0_19] : memref<4x128x128xbf16, #tpu.memory_space<vmem>>, vector<1x128x128xbf16>
    %37 = vector.shape_cast %36 : vector<1x128x128xbf16> to vector<128x128xbf16>
    %cst_20 = arith.constant dense<0.000000e+00> : vector<32x128xf32>
    %38 = tpu.matmul %35, %37, %cst_20 {dimension_numbers = #tpu.dot_dimension_numbers<[1], [0], [0], [1], [0, 0, 1, 1], [], []>} : vector<32x128xbf16>, vector<128x128xbf16>, vector<32x128xf32> -> vector<32x128xf32>
    %39 = vector.extract_strided_slice %0 {offsets = [4, 0], sizes = [1, 128], strides = [1, 1]} : vector<6x128xf32> to vector<1x128xf32>
    %40 = vector.broadcast %39 : vector<1x128xf32> to vector<32x128xf32>
    %41 = arith.addf %38, %40 : vector<32x128xf32>
    %42 = arith.addf %25, %41 : vector<32x128xf32>
    %43 = arith.truncf %42 : vector<32x128xf32> to vector<32x128xbf16>
    %c0_21 = arith.constant 0 : index
    %c0_22 = arith.constant 0 : index
    %44 = vector.load %arg4[%c0_21, %c0_22] : memref<128x128xbf16, #tpu.memory_space<vmem>>, vector<128x128xbf16>
    %cst_23 = arith.constant dense<0.000000e+00> : vector<32x128xf32>
    %45 = tpu.matmul %43, %44, %cst_23 {dimension_numbers = #tpu.dot_dimension_numbers<[1], [0], [0], [1], [0, 0, 1, 1], [], []>} : vector<32x128xbf16>, vector<128x128xbf16>, vector<32x128xf32> -> vector<32x128xf32>
    %46 = vector.extract_strided_slice %0 {offsets = [5, 0], sizes = [1, 128], strides = [1, 1]} : vector<6x128xf32> to vector<1x128xf32>
    %47 = vector.broadcast %46 : vector<1x128xf32> to vector<32x128xf32>
    %48 = arith.addf %45, %47 : vector<32x128xf32>
    %c0_24 = arith.constant 0 : index
    %c0_25 = arith.constant 0 : index
    %49 = vector.load %arg6[%c0_24, %c0_25] : memref<32x128xf32, #tpu.memory_space<vmem>>, vector<32x128xf32>
    tpu.vector_store %arg6[%c0_24, %c0_25], %48 {strides = array<i32>} : memref<32x128xf32, #tpu.memory_space<vmem>>, vector<32x128xf32>,
    return
  }
  func.func @transform_0(%arg0: i32) -> (i32, i32) {
    %c0_i32 = arith.constant 0 : i32
    %c0_i32_0 = arith.constant 0 : i32
    return %arg0, %c0_i32 : i32, i32
  }
  func.func @transform_1(%arg0: i32) -> (i32, i32) {
    %c0_i32 = arith.constant 0 : i32
    %c0_i32_0 = arith.constant 0 : i32
    %c0_i32_1 = arith.constant 0 : i32
    return %c0_i32, %c0_i32_0 : i32, i32
  }
  func.func @transform_2(%arg0: i32) -> (i32, i32, i32) {
    %c0_i32 = arith.constant 0 : i32
    %c0_i32_0 = arith.constant 0 : i32
    %c0_i32_1 = arith.constant 0 : i32
    %c0_i32_2 = arith.constant 0 : i32
    return %c0_i32, %c0_i32_0, %c0_i32_1 : i32, i32, i32
  }
  func.func @transform_3(%arg0: i32) -> (i32, i32) {
    %c0_i32 = arith.constant 0 : i32
    %c0_i32_0 = arith.constant 0 : i32
    %c0_i32_1 = arith.constant 0 : i32
    return %c0_i32, %c0_i32_0 : i32, i32
  }
  func.func @transform_4(%arg0: i32) -> (i32, i32) {
    %c0_i32 = arith.constant 0 : i32
    %c0_i32_0 = arith.constant 0 : i32
    %c0_i32_1 = arith.constant 0 : i32
    return %c0_i32, %c0_i32_0 : i32, i32
  }
  func.func @transform_5(%arg0: i32) -> (i32, i32) {
    %c0_i32 = arith.constant 0 : i32
    %c0_i32_0 = arith.constant 0 : i32
    return %arg0, %c0_i32 : i32, i32
  }
}

</mosaic_0001>

<llo_original>
// kernel: tpu_custom_call.1
$region0: #{tpu_custom_call.1}
  #allocation0 [shape = 'u32[]', space=smem, size = 0x4, offset = 0x4, fixed_abs, tag = 'smem constant byte address 0x4 - core index']
  #allocation1 [shape = 'u32[144,128]{1,0:T(1,128)}', space=vmem, size = 0x12000, scoped, tag = 'internal scratch']
  %s0 = inlined_call_operand.hbm [shape: bf16[32,128], index: 0, kind: input, shape index: {}]
  %s1 = inlined_call_operand.hbm [shape: bf16[128,128], index: 1, kind: input, shape index: {}]
  %s2 = inlined_call_operand.hbm [shape: bf16[4,128,128], index: 2, kind: input, shape index: {}]
  %s3 = inlined_call_operand.hbm [shape: bf16[128,128], index: 3, kind: input, shape index: {}]
  %s4 = inlined_call_operand.vmem [shape: f32[6,128], index: 4, kind: input, shape index: {}]
  %s5 = inlined_call_operand.hbm [shape: f32[32,128], index: 5, kind: output, shape index: {}]
  %s6 = sld [smem:[#allocation0]]
  $region46: #{tpu_custom_call.1} parent=0
    _
  %s8 = ssub.s32 1, %s6
  %s9 = scalar_select 0, %s8, %s6
  $region1: #{tpu_custom_call.1} parent=0
    #allocation2 [shape = 'u8[8192]{0}', space=vmem, size = 0x2000, scoped, tag = 'input window, operand 0, single buffered']
    #allocation3 [shape = 's32[1]{0}', space=sflag, size = 0x4, scoped, tag = 'scoped memory for tpu_custom_call.1']
    #allocation4 [shape = 's32[1]{0}', space=sflag, size = 0x4, scoped, tag = 'scoped memory for tpu_custom_call.1']
    #allocation5 [shape = 'u8[32768]{0}', space=vmem, size = 0x8000, scoped, tag = 'input window, operand 1, single buffered']
    #allocation6 [shape = 's32[1]{0}', space=sflag, size = 0x4, scoped, tag = 'scoped memory for tpu_custom_call.1']
    #allocation7 [shape = 'u8[131072]{0}', space=vmem, size = 0x20000, scoped, tag = 'input window, operand 2, single buffered']
    #allocation8 [shape = 'u8[32768]{0}', space=vmem, size = 0x8000, scoped, tag = 'input window, operand 3, single buffered']
    #allocation9 [shape = 's32[1]{0}', space=sflag, size = 0x4, scoped, tag = 'scoped memory for tpu_custom_call.1']
    #allocation10 [shape = 'u8[16384]{0}', space=vmem, size = 0x4000, scoped, tag = 'output window, operand 0, single buffered']
    %10 = vsyncpa [#allocation3], 0
    %11 = vsyncpa [#allocation6], 0
    %12 = vsyncpa [#allocation9], 0
    %13 = vsyncpa [#allocation4], 0
    // Predicated region
    $region2: #{tpu_custom_call.1} parent=1 // pred_check
      _
    $region3: #{tpu_custom_call.1} parent=1 // pred_check_branch
      %15 = sbr.rel (0) target = $region5
    $region4: #{tpu_custom_call.1} parent=1 // pred_region
      %s17 = ssub.s32 256, 256
      %18 = vsyncadd [#allocation3], %s17
      %s19 = sshll.u32 [#allocation2], 4
      %s20 = int_to_ptr.vmem [resolvable:$true] %s19
      %25 = dma.hbm_to_vmem [thread:$0]  %s0, 256, %s20, [#allocation3], 64, 64, 4
    $region5: #{tpu_custom_call.1} parent=1 // pred_fallthru
      _
    // Predicated region
    $region6: #{tpu_custom_call.1} parent=1 // pred_check
      _
    $region7: #{tpu_custom_call.1} parent=1 // pred_check_branch
      %27 = sbr.rel (0) target = $region9
    $region8: #{tpu_custom_call.1} parent=1 // pred_region
      %s29 = ssub.s32 1024, 1024
      %30 = vsyncadd [#allocation6], %s29
      %s31 = sshll.u32 [#allocation5], 4
      %s32 = int_to_ptr.vmem [resolvable:$true] %s31
      %37 = dma.hbm_to_vmem [thread:$0]  %s1, 1024, %s32, [#allocation6], 64, 64, 4
    $region9: #{tpu_custom_call.1} parent=1 // pred_fallthru
      _
    // Predicated region
    $region10: #{tpu_custom_call.1} parent=1 // pred_check
      _
    $region11: #{tpu_custom_call.1} parent=1 // pred_check_branch
      %39 = sbr.rel (0) target = $region13
    $region12: #{tpu_custom_call.1} parent=1 // pred_region
      %s41 = ssub.s32 4096, 4096
      %42 = vsyncadd [#allocation6], %s41
      %s43 = sshll.u32 [#allocation7], 4
      %s44 = int_to_ptr.vmem [resolvable:$true] %s43
      %49 = dma.hbm_to_vmem [thread:$0]  %s2, 4096, %s44, [#allocation6], 64, 64, 4
    $region13: #{tpu_custom_call.1} parent=1 // pred_fallthru
      _
    // Predicated region
    $region14: #{tpu_custom_call.1} parent=1 // pred_check
      _
    $region15: #{tpu_custom_call.1} parent=1 // pred_check_branch
      %51 = sbr.rel (0) target = $region17
    $region16: #{tpu_custom_call.1} parent=1 // pred_region
      %s53 = ssub.s32 1024, 1024
      %54 = vsyncadd [#allocation9], %s53
      %s55 = sshll.u32 [#allocation8], 4
      %s56 = int_to_ptr.vmem [resolvable:$true] %s55
      %61 = dma.hbm_to_vmem [thread:$0]  %s3, 1024, %s56, [#allocation9], 64, 64, 4
    $region17: #{tpu_custom_call.1} parent=1 // pred_fallthru
      _
    // Predicated region
    $region18: #{tpu_custom_call.1} parent=1 // pred_check
      _
    $region19: #{tpu_custom_call.1} parent=1 // pred_check_branch
      %63 = sbr.rel (0) target = $region21
    $region20: #{tpu_custom_call.1} parent=1 // pred_region
      _
    $region21: #{tpu_custom_call.1} parent=1 // pred_fallthru
      _
    // Predicated region
    $region22: #{tpu_custom_call.1} parent=1 // pred_check
      _
    $region23: #{tpu_custom_call.1} parent=1 // pred_check_branch
      %65 = sbr.rel (0) target = $region25
    $region24: #{tpu_custom_call.1} parent=1 // pred_region
      %66 = dma.done [#allocation3], 256
    $region25: #{tpu_custom_call.1} parent=1 // pred_fallthru
      _
    // Predicated region
    $region26: #{tpu_custom_call.1} parent=1 // pred_check
      _
    $region27: #{tpu_custom_call.1} parent=1 // pred_check_branch
      %68 = sbr.rel (0) target = $region29
    $region28: #{tpu_custom_call.1} parent=1 // pred_region
      %69 = dma.done [#allocation6], 1024
    $region29: #{tpu_custom_call.1} parent=1 // pred_fallthru
      _
    // Predicated region
    $region30: #{tpu_custom_call.1} parent=1 // pred_check
      _
    $region31: #{tpu_custom_call.1} parent=1 // pred_check_branch
      %71 = sbr.rel (0) target = $region33
    $region32: #{tpu_custom_call.1} parent=1 // pred_region
      %72 = dma.done [#allocation6], 4096
    $region33: #{tpu_custom_call.1} parent=1 // pred_fallthru
      _
    // Predicated region
    $region34: #{tpu_custom_call.1} parent=1 // pred_check
      _
    $region35: #{tpu_custom_call.1} parent=1 // pred_check_branch
      %74 = sbr.rel (0) target = $region37
    $region36: #{tpu_custom_call.1} parent=1 // pred_region
      %75 = dma.done [#allocation9], 1024
    $region37: #{tpu_custom_call.1} parent=1 // pred_fallthru
      _
    %v77 = vld [vmem:[%s4] sm:$0x3f]
    %v78 = vld [vmem:[#allocation2] sm:$0xf]
    %v79 = vld [vmem:[#allocation2 + $0x4] sm:$0xf]
    %v80 = vld [vmem:[#allocation2 + $0x8] sm:$0xf]
    %v81 = vld [vmem:[#allocation2 + $0xc] sm:$0xf]
    %v82 = vld [vmem:[#allocation5] sm:$0xf]
    %v83 = vld [vmem:[#allocation5 + $0x4] sm:$0xf]
    %v84 = vld [vmem:[#allocation5 + $0x8] sm:$0xf]
    %v85 = vld [vmem:[#allocation5 + $0xc] sm:$0xf]
    %v86 = vld [vmem:[#allocation5 + $0x10] sm:$0xf]
    %v87 = vld [vmem:[#allocation5 + $0x14] sm:$0xf]
    %v88 = vld [vmem:[#allocation5 + $0x18] sm:$0xf]
    %v89 = vld [vmem:[#allocation5 + $0x1c] sm:$0xf]
    %v90 = vld [vmem:[#allocation5 + $0x20] sm:$0xf]
    %v91 = vld [vmem:[#allocation5 + $0x24] sm:$0xf]
    %v92 = vld [vmem:[#allocation5 + $0x28] sm:$0xf]
    %v93 = vld [vmem:[#allocation5 + $0x2c] sm:$0xf]
    %v94 = vld [vmem:[#allocation5 + $0x30] sm:$0xf]
    %v95 = vld [vmem:[#allocation5 + $0x34] sm:$0xf]
    %v96 = vld [vmem:[#allocation5 + $0x38] sm:$0xf]
    %v97 = vld [vmem:[#allocation5 + $0x3c] sm:$0xf]
    %v98 = vlaneseq
    %v99 = vshrl.u32 %v98, 7
    %v100 = vsub.s32 0, %v99
    %v101 = vrot.slane %v77, %v100
    %v106 = vunpack.c.l.b16 %v78
    %v107 = vunpack.c.l.b16 %v79
    %v108 = vunpack.c.l.b16 %v80
    %v109 = vunpack.c.l.b16 %v81
    %v110 = vpack.c.b16 %v107, %v106
    %v111 = vpack.c.b16 %v109, %v108
    %v130 = vunpack.c.l.b16 %v82
    %v131 = vunpack.c.l.b16 %v83
    %v132 = vunpack.c.l.b16 %v84
    %v133 = vunpack.c.l.b16 %v85
    %v134 = vunpack.c.l.b16 %v86
    %v135 = vunpack.c.l.b16 %v87
    %v136 = vunpack.c.l.b16 %v88
    %v137 = vunpack.c.l.b16 %v89
    %v138 = vunpack.c.l.b16 %v90
    %v139 = vunpack.c.l.b16 %v91
    %v140 = vunpack.c.l.b16 %v92
    %v141 = vunpack.c.l.b16 %v93
    %v142 = vunpack.c.l.b16 %v94
    %v143 = vunpack.c.l.b16 %v95
    %v144 = vunpack.c.l.b16 %v96
    %v145 = vunpack.c.l.b16 %v97
    %v146 = vpack.c.b16 %v131, %v130
    %v147 = vpack.c.b16 %v133, %v132
    %v148 = vpack.c.b16 %v135, %v134
    %v149 = vpack.c.b16 %v137, %v136
    %v150 = vpack.c.b16 %v139, %v138
    %v151 = vpack.c.b16 %v141, %v140
    %v152 = vpack.c.b16 %v143, %v142
    %v153 = vpack.c.b16 %v145, %v144
    %162 = vmatprep.subr.bf16.mxu0 0
    %163 = vmatpush1.bf16.msra.mxu0 %v146
    %164 = vmatprep.subr.bf16.mxu0 0
    %165 = vmatpush1.bf16.msra.mxu0 %v147
    %166 = vmatprep.subr.bf16.mxu0 0
    %167 = vmatpush1.bf16.msra.mxu0 %v148
    %168 = vmatprep.subr.bf16.mxu0 0
    %169 = vmatpush1.bf16.msra.mxu0 %v149
    %170 = vmatprep.subr.bf16.mxu0 0
    %171 = vmatpush1.bf16.msra.mxu0 %v150
    %172 = vmatprep.subr.bf16.mxu0 0
    %173 = vmatpush1.bf16.msra.mxu0 %v151
    %174 = vmatprep.subr.bf16.mxu0 0
    %175 = vmatpush1.bf16.msra.mxu0 %v152
    %176 = vmatprep.subr.bf16.mxu0 0
    %177 = vmatpush1.bf16.msra.mxu0 %v153
    %178 = vmatprep.subr.bf16.mxu0 0
    %179 = vmatpush1.bf16.msra.mxu0 0
    %180 = vmatprep.subr.bf16.mxu0 0
    %181 = vmatpush1.bf16.msra.mxu0 0
    %182 = vmatprep.subr.bf16.mxu0 0
    %183 = vmatpush1.bf16.msra.mxu0 0
    %184 = vmatprep.subr.bf16.mxu0 0
    %185 = vmatpush1.bf16.msra.mxu0 0
    %186 = vmatprep.subr.bf16.mxu0 0
    %187 = vmatpush1.bf16.msra.mxu0 0
    %188 = vmatprep.subr.bf16.mxu0 0
    %189 = vmatpush1.bf16.msra.mxu0 0
    %190 = vmatprep.subr.bf16.mxu0 0
    %191 = vmatpush1.bf16.msra.mxu0 0
    %192 = vmatprep.subr.bf16.mxu0 0
    %193 = vmatpush1.bf16.msra.mxu0 0
    %194 = vmatprep.mubr.bf16.mxu0 0
    %195 = vmatmul.mubr.bf16.gmra.mrb[0].mxu0 %v110
    %v196 = vpop.f32.mrb[0].mxu0
    %v197 = vadd.f32 %v101, %v196
    %v198 = vpop.f32.mrb[0].mxu0
    %v199 = vpop.f32.mrb[0].mxu0
    %v200 = vadd.f32 %v101, %v199
    %v201 = vpop.f32.mrb[0].mxu0
    %202 = vmatprep.mubr.bf16.mxu0 0
    %203 = vmatmul.mubr.bf16.gmra.mrb[0].mxu0 %v111
    %v204 = vpop.f32.mrb[0].mxu0
    %v205 = vadd.f32 %v101, %v204
    %v206 = vpop.f32.mrb[0].mxu0
    %v207 = vpop.f32.mrb[0].mxu0
    %v208 = vadd.f32 %v101, %v207
    %v209 = vpop.f32.mrb[0].mxu0
    %210 = vdwg.mxu0
    %v211 = vmax.f32 %v197, 0.0
    %v212 = vmax.f32 %v200, 0.0
    %v213 = vmax.f32 %v205, 0.0
    %v214 = vmax.f32 %v208, 0.0
    %v215 = vpack.c.bf16 %v212, %v211
    %v216 = vpack.c.bf16 %v214, %v213
    %v217 = vld [vmem:[#allocation7] sm:$0xf]
    %v218 = vld [vmem:[#allocation7 + $0x4] sm:$0xf]
    %v219 = vld [vmem:[#allocation7 + $0x8] sm:$0xf]
    %v220 = vld [vmem:[#allocation7 + $0xc] sm:$0xf]
    %v221 = vld [vmem:[#allocation7 + $0x10] sm:$0xf]
    %v222 = vld [vmem:[#allocation7 + $0x14] sm:$0xf]
    %v223 = vld [vmem:[#allocation7 + $0x18] sm:$0xf]
    %v224 = vld [vmem:[#allocation7 + $0x1c] sm:$0xf]
    %v225 = vld [vmem:[#allocation7 + $0x20] sm:$0xf]
    %v226 = vld [vmem:[#allocation7 + $0x24] sm:$0xf]
    %v227 = vld [vmem:[#allocation7 + $0x28] sm:$0xf]
    %v228 = vld [vmem:[#allocation7 + $0x2c] sm:$0xf]
    %v229 = vld [vmem:[#allocation7 + $0x30] sm:$0xf]
    %v230 = vld [vmem:[#allocation7 + $0x34] sm:$0xf]
    %v231 = vld [vmem:[#allocation7 + $0x38] sm:$0xf]
    %v232 = vld [vmem:[#allocation7 + $0x3c] sm:$0xf]
    %v233 = vlaneseq
    %v234 = vshrl.u32 %v233, 7
    %v235 = vsub.s32 1, %v234
    %v236 = vrot.slane %v77, %v235
    %v253 = vunpack.c.l.b16 %v217
    %v254 = vunpack.c.l.b16 %v218
    %v255 = vunpack.c.l.b16 %v219
    %v256 = vunpack.c.l.b16 %v220
    %v257 = vunpack.c.l.b16 %v221
    %v258 = vunpack.c.l.b16 %v222
    %v259 = vunpack.c.l.b16 %v223
    %v260 = vunpack.c.l.b16 %v224
    %v261 = vunpack.c.l.b16 %v225
    %v262 = vunpack.c.l.b16 %v226
    %v263 = vunpack.c.l.b16 %v227
    %v264 = vunpack.c.l.b16 %v228
    %v265 = vunpack.c.l.b16 %v229
    %v266 = vunpack.c.l.b16 %v230
    %v267 = vunpack.c.l.b16 %v231
    %v268 = vunpack.c.l.b16 %v232
    %v269 = vpack.c.b16 %v254, %v253
    %v270 = vpack.c.b16 %v256, %v255
    %v271 = vpack.c.b16 %v258, %v257
    %v272 = vpack.c.b16 %v260, %v259
    %v273 = vpack.c.b16 %v262, %v261
    %v274 = vpack.c.b16 %v264, %v263
    %v275 = vpack.c.b16 %v266, %v265
    %v276 = vpack.c.b16 %v268, %v267
    %285 = vmatprep.subr.bf16.mxu0 0
    %286 = vmatpush1.bf16.msra.mxu0 %v269
    %287 = vmatprep.subr.bf16.mxu0 0
    %288 = vmatpush1.bf16.msra.mxu0 %v270
    %289 = vmatprep.subr.bf16.mxu0 0
    %290 = vmatpush1.bf16.msra.mxu0 %v271
    %291 = vmatprep.subr.bf16.mxu0 0
    %292 = vmatpush1.bf16.msra.mxu0 %v272
    %293 = vmatprep.subr.bf16.mxu0 0
    %294 = vmatpush1.bf16.msra.mxu0 %v273
    %295 = vmatprep.subr.bf16.mxu0 0
    %296 = vmatpush1.bf16.msra.mxu0 %v274
    %297 = vmatprep.subr.bf16.mxu0 0
    %298 = vmatpush1.bf16.msra.mxu0 %v275
    %299 = vmatprep.subr.bf16.mxu0 0
    %300 = vmatpush1.bf16.msra.mxu0 %v276
    %301 = vmatprep.subr.bf16.mxu0 0
    %302 = vmatpush1.bf16.msra.mxu0 0
    %303 = vmatprep.subr.bf16.mxu0 0
    %304 = vmatpush1.bf16.msra.mxu0 0
    %305 = vmatprep.subr.bf16.mxu0 0
    %306 = vmatpush1.bf16.msra.mxu0 0
    %307 = vmatprep.subr.bf16.mxu0 0
    %308 = vmatpush1.bf16.msra.mxu0 0
    %309 = vmatprep.subr.bf16.mxu0 0
    %310 = vmatpush1.bf16.msra.mxu0 0
    %311 = vmatprep.subr.bf16.mxu0 0
    %312 = vmatpush1.bf16.msra.mxu0 0
    %313 = vmatprep.subr.bf16.mxu0 0
    %314 = vmatpush1.bf16.msra.mxu0 0
    %315 = vmatprep.subr.bf16.mxu0 0
    %316 = vmatpush1.bf16.msra.mxu0 0
    %317 = vmatprep.mubr.bf16.mxu0 0
    %318 = vmatmul.mubr.bf16.gmra.mrb[0].mxu0 %v215
    %v319 = vpop.f32.mrb[0].mxu0
    %v320 = vadd.f32 %v236, %v319
    %v321 = vpop.f32.mrb[0].mxu0
    %v322 = vpop.f32.mrb[0].mxu0
    %v323 = vadd.f32 %v236, %v322
    %v324 = vpop.f32.mrb[0].mxu0
    %325 = vmatprep.mubr.bf16.mxu0 0
    %326 = vmatmul.mubr.bf16.gmra.mrb[0].mxu0 %v216
    %v327 = vpop.f32.mrb[0].mxu0
    %v328 = vadd.f32 %v236, %v327
    %v329 = vpop.f32.mrb[0].mxu0
    %v330 = vpop.f32.mrb[0].mxu0
    %v331 = vadd.f32 %v236, %v330
    %v332 = vpop.f32.mrb[0].mxu0
    %333 = vdwg.mxu0
    %v334 = vmax.f32 %v320, 0.0
    %v335 = vmax.f32 %v323, 0.0
    %v336 = vmax.f32 %v328, 0.0
    %v337 = vmax.f32 %v331, 0.0
    %v338 = vpack.c.bf16 %v335, %v334
    %v339 = vpack.c.bf16 %v337, %v336
    %s340 = scalar_lea.vmem [#allocation7], 64
    %v341 = vld [vmem:[%s340] sm:$0xf]
    %v342 = vld [vmem:[%s340 + $0x4] sm:$0xf]
    %v343 = vld [vmem:[%s340 + $0x8] sm:$0xf]
    %v344 = vld [vmem:[%s340 + $0xc] sm:$0xf]
    %v345 = vld [vmem:[%s340 + $0x10] sm:$0xf]
    %v346 = vld [vmem:[%s340 + $0x14] sm:$0xf]
    %v347 = vld [vmem:[%s340 + $0x18] sm:$0xf]
    %v348 = vld [vmem:[%s340 + $0x1c] sm:$0xf]
    %v349 = vld [vmem:[%s340 + $0x20] sm:$0xf]
    %v350 = vld [vmem:[%s340 + $0x24] sm:$0xf]
    %v351 = vld [vmem:[%s340 + $0x28] sm:$0xf]
    %v352 = vld [vmem:[%s340 + $0x2c] sm:$0xf]
    %v353 = vld [vmem:[%s340 + $0x30] sm:$0xf]
    %v354 = vld [vmem:[%s340 + $0x34] sm:$0xf]
    %v355 = vld [vmem:[%s340 + $0x38] sm:$0xf]
    %v356 = vld [vmem:[%s340 + $0x3c] sm:$0xf]
    %v357 = vlaneseq
    %v358 = vshrl.u32 %v357, 7
    %v359 = vsub.s32 2, %v358
    %v360 = vrot.slane %v77, %v359
    %v377 = vunpack.c.l.b16 %v341
    %v378 = vunpack.c.l.b16 %v342
    %v379 = vunpack.c.l.b16 %v343
    %v380 = vunpack.c.l.b16 %v344
    %v381 = vunpack.c.l.b16 %v345
    %v382 = vunpack.c.l.b16 %v346
    %v383 = vunpack.c.l.b16 %v347
    %v384 = vunpack.c.l.b16 %v348
    %v385 = vunpack.c.l.b16 %v349
    %v386 = vunpack.c.l.b16 %v350
    %v387 = vunpack.c.l.b16 %v351
    %v388 = vunpack.c.l.b16 %v352
    %v389 = vunpack.c.l.b16 %v353
    %v390 = vunpack.c.l.b16 %v354
    %v391 = vunpack.c.l.b16 %v355
    %v392 = vunpack.c.l.b16 %v356
    %v393 = vpack.c.b16 %v378, %v377
    %v394 = vpack.c.b16 %v380, %v379
    %v395 = vpack.c.b16 %v382, %v381
    %v396 = vpack.c.b16 %v384, %v383
    %v397 = vpack.c.b16 %v386, %v385
    %v398 = vpack.c.b16 %v388, %v387
    %v399 = vpack.c.b16 %v390, %v389
    %v400 = vpack.c.b16 %v392, %v391
    %409 = vmatprep.subr.bf16.mxu0 0
    %410 = vmatpush1.bf16.msra.mxu0 %v393
    %411 = vmatprep.subr.bf16.mxu0 0
    %412 = vmatpush1.bf16.msra.mxu0 %v394
    %413 = vmatprep.subr.bf16.mxu0 0
    %414 = vmatpush1.bf16.msra.mxu0 %v395
    %415 = vmatprep.subr.bf16.mxu0 0
    %416 = vmatpush1.bf16.msra.mxu0 %v396
    %417 = vmatprep.subr.bf16.mxu0 0
    %418 = vmatpush1.bf16.msra.mxu0 %v397
    %419 = vmatprep.subr.bf16.mxu0 0
    %420 = vmatpush1.bf16.msra.mxu0 %v398
    %421 = vmatprep.subr.bf16.mxu0 0
    %422 = vmatpush1.bf16.msra.mxu0 %v399
    %423 = vmatprep.subr.bf16.mxu0 0
    %424 = vmatpush1.bf16.msra.mxu0 %v400
    %425 = vmatprep.subr.bf16.mxu0 0
    %426 = vmatpush1.bf16.msra.mxu0 0
    %427 = vmatprep.subr.bf16.mxu0 0
    %428 = vmatpush1.bf16.msra.mxu0 0
    %429 = vmatprep.subr.bf16.mxu0 0
    %430 = vmatpush1.bf16.msra.mxu0 0
    %431 = vmatprep.subr.bf16.mxu0 0
    %432 = vmatpush1.bf16.msra.mxu0 0
    %433 = vmatprep.subr.bf16.mxu0 0
    %434 = vmatpush1.bf16.msra.mxu0 0
    %435 = vmatprep.subr.bf16.mxu0 0
    %436 = vmatpush1.bf16.msra.mxu0 0
    %437 = vmatprep.subr.bf16.mxu0 0
    %438 = vmatpush1.bf16.msra.mxu0 0
    %439 = vmatprep.subr.bf16.mxu0 0
    %440 = vmatpush1.bf16.msra.mxu0 0
    %441 = vmatprep.mubr.bf16.mxu0 0
    %442 = vmatmul.mubr.bf16.gmra.mrb[0].mxu0 %v338
    %v443 = vpop.f32.mrb[0].mxu0
    %v444 = vadd.f32 %v360, %v443
    %v445 = vpop.f32.mrb[0].mxu0
    %v446 = vpop.f32.mrb[0].mxu0
    %v447 = vadd.f32 %v360, %v446
    %v448 = vpop.f32.mrb[0].mxu0
    %449 = vmatprep.mubr.bf16.mxu0 0
    %450 = vmatmul.mubr.bf16.gmra.mrb[0].mxu0 %v339
    %v451 = vpop.f32.mrb[0].mxu0
    %v452 = vadd.f32 %v360, %v451
    %v453 = vpop.f32.mrb[0].mxu0
    %v454 = vpop.f32.mrb[0].mxu0
    %v455 = vadd.f32 %v360, %v454
    %v456 = vpop.f32.mrb[0].mxu0
    %457 = vdwg.mxu0
    %v458 = vadd.f32 %v211, %v444
    %v459 = vadd.f32 %v212, %v447
    %v460 = vadd.f32 %v213, %v452
    %v461 = vadd.f32 %v214, %v455
    %v462 = vpack.c.bf16 %v459, %v458
    %v463 = vpack.c.bf16 %v461, %v460
    %s464 = scalar_lea.vmem [#allocation7], 128
    %v465 = vld [vmem:[%s464] sm:$0xf]
    %v466 = vld [vmem:[%s464 + $0x4] sm:$0xf]
    %v467 = vld [vmem:[%s464 + $0x8] sm:$0xf]
    %v468 = vld [vmem:[%s464 + $0xc] sm:$0xf]
    %v469 = vld [vmem:[%s464 + $0x10] sm:$0xf]
    %v470 = vld [vmem:[%s464 + $0x14] sm:$0xf]
    %v471 = vld [vmem:[%s464 + $0x18] sm:$0xf]
    %v472 = vld [vmem:[%s464 + $0x1c] sm:$0xf]
    %v473 = vld [vmem:[%s464 + $0x20] sm:$0xf]
    %v474 = vld [vmem:[%s464 + $0x24] sm:$0xf]
    %v475 = vld [vmem:[%s464 + $0x28] sm:$0xf]
    %v476 = vld [vmem:[%s464 + $0x2c] sm:$0xf]
    %v477 = vld [vmem:[%s464 + $0x30] sm:$0xf]
    %v478 = vld [vmem:[%s464 + $0x34] sm:$0xf]
    %v479 = vld [vmem:[%s464 + $0x38] sm:$0xf]
    %v480 = vld [vmem:[%s464 + $0x3c] sm:$0xf]
    %v481 = vlaneseq
    %v482 = vshrl.u32 %v481, 7
    %v483 = vsub.s32 3, %v482
    %v484 = vrot.slane %v77, %v483
    %v501 = vunpack.c.l.b16 %v465
    %v502 = vunpack.c.l.b16 %v466
    %v503 = vunpack.c.l.b16 %v467
    %v504 = vunpack.c.l.b16 %v468
    %v505 = vunpack.c.l.b16 %v469
    %v506 = vunpack.c.l.b16 %v470
    %v507 = vunpack.c.l.b16 %v471
    %v508 = vunpack.c.l.b16 %v472
    %v509 = vunpack.c.l.b16 %v473
    %v510 = vunpack.c.l.b16 %v474
    %v511 = vunpack.c.l.b16 %v475
    %v512 = vunpack.c.l.b16 %v476
    %v513 = vunpack.c.l.b16 %v477
    %v514 = vunpack.c.l.b16 %v478
    %v515 = vunpack.c.l.b16 %v479
    %v516 = vunpack.c.l.b16 %v480
    %v517 = vpack.c.b16 %v502, %v501
    %v518 = vpack.c.b16 %v504, %v503
    %v519 = vpack.c.b16 %v506, %v505
    %v520 = vpack.c.b16 %v508, %v507
    %v521 = vpack.c.b16 %v510, %v509
    %v522 = vpack.c.b16 %v512, %v511
    %v523 = vpack.c.b16 %v514, %v513
    %v524 = vpack.c.b16 %v516, %v515
    %533 = vmatprep.subr.bf16.mxu0 0
    %534 = vmatpush1.bf16.msra.mxu0 %v517
    %535 = vmatprep.subr.bf16.mxu0 0
    %536 = vmatpush1.bf16.msra.mxu0 %v518
    %537 = vmatprep.subr.bf16.mxu0 0
    %538 = vmatpush1.bf16.msra.mxu0 %v519
    %539 = vmatprep.subr.bf16.mxu0 0
    %540 = vmatpush1.bf16.msra.mxu0 %v520
    %541 = vmatprep.subr.bf16.mxu0 0
    %542 = vmatpush1.bf16.msra.mxu0 %v521
    %543 = vmatprep.subr.bf16.mxu0 0
    %544 = vmatpush1.bf16.msra.mxu0 %v522
    %545 = vmatprep.subr.bf16.mxu0 0
    %546 = vmatpush1.bf16.msra.mxu0 %v523
    %547 = vmatprep.subr.bf16.mxu0 0
    %548 = vmatpush1.bf16.msra.mxu0 %v524
    %549 = vmatprep.subr.bf16.mxu0 0
    %550 = vmatpush1.bf16.msra.mxu0 0
    %551 = vmatprep.subr.bf16.mxu0 0
    %552 = vmatpush1.bf16.msra.mxu0 0
    %553 = vmatprep.subr.bf16.mxu0 0
    %554 = vmatpush1.bf16.msra.mxu0 0
    %555 = vmatprep.subr.bf16.mxu0 0
    %556 = vmatpush1.bf16.msra.mxu0 0
    %557 = vmatprep.subr.bf16.mxu0 0
    %558 = vmatpush1.bf16.msra.mxu0 0
    %559 = vmatprep.subr.bf16.mxu0 0
    %560 = vmatpush1.bf16.msra.mxu0 0
    %561 = vmatprep.subr.bf16.mxu0 0
    %562 = vmatpush1.bf16.msra.mxu0 0
    %563 = vmatprep.subr.bf16.mxu0 0
    %564 = vmatpush1.bf16.msra.mxu0 0
    %565 = vmatprep.mubr.bf16.mxu0 0
    %566 = vmatmul.mubr.bf16.gmra.mrb[0].mxu0 %v462
    %v567 = vpop.f32.mrb[0].mxu0
    %v568 = vadd.f32 %v484, %v567
    %v569 = vpop.f32.mrb[0].mxu0
    %v570 = vpop.f32.mrb[0].mxu0
    %v571 = vadd.f32 %v484, %v570
    %v572 = vpop.f32.mrb[0].mxu0
    %573 = vmatprep.mubr.bf16.mxu0 0
    %574 = vmatmul.mubr.bf16.gmra.mrb[0].mxu0 %v463
    %v575 = vpop.f32.mrb[0].mxu0
    %v576 = vadd.f32 %v484, %v575
    %v577 = vpop.f32.mrb[0].mxu0
    %v578 = vpop.f32.mrb[0].mxu0
    %v579 = vadd.f32 %v484, %v578
    %v580 = vpop.f32.mrb[0].mxu0
    %581 = vdwg.mxu0
    %v582 = vmax.f32 %v568, 0.0
    %v583 = vmax.f32 %v571, 0.0
    %v584 = vmax.f32 %v576, 0.0
    %v585 = vmax.f32 %v579, 0.0
    %v586 = vpack.c.bf16 %v583, %v582
    %v587 = vpack.c.bf16 %v585, %v584
    %s588 = scalar_lea.vmem [#allocation7], 192
    %v589 = vld [vmem:[%s588] sm:$0xf]
    %v590 = vld [vmem:[%s588 + $0x4] sm:$0xf]
    %v591 = vld [vmem:[%s588 + $0x8] sm:$0xf]
    %v592 = vld [vmem:[%s588 + $0xc] sm:$0xf]
    %v593 = vld [vmem:[%s588 + $0x10] sm:$0xf]
    %v594 = vld [vmem:[%s588 + $0x14] sm:$0xf]
    %v595 = vld [vmem:[%s588 + $0x18] sm:$0xf]
    %v596 = vld [vmem:[%s588 + $0x1c] sm:$0xf]
    %v597 = vld [vmem:[%s588 + $0x20] sm:$0xf]
    %v598 = vld [vmem:[%s588 + $0x24] sm:$0xf]
    %v599 = vld [vmem:[%s588 + $0x28] sm:$0xf]
    %v600 = vld [vmem:[%s588 + $0x2c] sm:$0xf]
    %v601 = vld [vmem:[%s588 + $0x30] sm:$0xf]
    %v602 = vld [vmem:[%s588 + $0x34] sm:$0xf]
    %v603 = vld [vmem:[%s588 + $0x38] sm:$0xf]
    %v604 = vld [vmem:[%s588 + $0x3c] sm:$0xf]
    %v605 = vlaneseq
    %v606 = vshrl.u32 %v605, 7
    %v607 = vsub.s32 4, %v606
    %v608 = vrot.slane %v77, %v607
    %v625 = vunpack.c.l.b16 %v589
    %v626 = vunpack.c.l.b16 %v590
    %v627 = vunpack.c.l.b16 %v591
    %v628 = vunpack.c.l.b16 %v592
    %v629 = vunpack.c.l.b16 %v593
    %v630 = vunpack.c.l.b16 %v594
    %v631 = vunpack.c.l.b16 %v595
    %v632 = vunpack.c.l.b16 %v596
    %v633 = vunpack.c.l.b16 %v597
    %v634 = vunpack.c.l.b16 %v598
    %v635 = vunpack.c.l.b16 %v599
    %v636 = vunpack.c.l.b16 %v600
    %v637 = vunpack.c.l.b16 %v601
    %v638 = vunpack.c.l.b16 %v602
    %v639 = vunpack.c.l.b16 %v603
    %v640 = vunpack.c.l.b16 %v604
    %v641 = vpack.c.b16 %v626, %v625
    %v642 = vpack.c.b16 %v628, %v627
    %v643 = vpack.c.b16 %v630, %v629
    %v644 = vpack.c.b16 %v632, %v631
    %v645 = vpack.c.b16 %v634, %v633
    %v646 = vpack.c.b16 %v636, %v635
    %v647 = vpack.c.b16 %v638, %v637
    %v648 = vpack.c.b16 %v640, %v639
    %657 = vmatprep.subr.bf16.mxu0 0
    %658 = vmatpush1.bf16.msra.mxu0 %v641
    %659 = vmatprep.subr.bf16.mxu0 0
    %660 = vmatpush1.bf16.msra.mxu0 %v642
    %661 = vmatprep.subr.bf16.mxu0 0
    %662 = vmatpush1.bf16.msra.mxu0 %v643
    %663 = vmatprep.subr.bf16.mxu0 0
    %664 = vmatpush1.bf16.msra.mxu0 %v644
    %665 = vmatprep.subr.bf16.mxu0 0
    %666 = vmatpush1.bf16.msra.mxu0 %v645
    %667 = vmatprep.subr.bf16.mxu0 0
    %668 = vmatpush1.bf16.msra.mxu0 %v646
    %669 = vmatprep.subr.bf16.mxu0 0
    %670 = vmatpush1.bf16.msra.mxu0 %v647
    %671 = vmatprep.subr.bf16.mxu0 0
    %672 = vmatpush1.bf16.msra.mxu0 %v648
    %673 = vmatprep.subr.bf16.mxu0 0
    %674 = vmatpush1.bf16.msra.mxu0 0
    %675 = vmatprep.subr.bf16.mxu0 0
    %676 = vmatpush1.bf16.msra.mxu0 0
    %677 = vmatprep.subr.bf16.mxu0 0
    %678 = vmatpush1.bf16.msra.mxu0 0
    %679 = vmatprep.subr.bf16.mxu0 0
    %680 = vmatpush1.bf16.msra.mxu0 0
    %681 = vmatprep.subr.bf16.mxu0 0
    %682 = vmatpush1.bf16.msra.mxu0 0
    %683 = vmatprep.subr.bf16.mxu0 0
    %684 = vmatpush1.bf16.msra.mxu0 0
    %685 = vmatprep.subr.bf16.mxu0 0
    %686 = vmatpush1.bf16.msra.mxu0 0
    %687 = vmatprep.subr.bf16.mxu0 0
    %688 = vmatpush1.bf16.msra.mxu0 0
    %689 = vmatprep.mubr.bf16.mxu0 0
    %690 = vmatmul.mubr.bf16.gmra.mrb[0].mxu0 %v586
    %v691 = vpop.f32.mrb[0].mxu0
    %v692 = vadd.f32 %v608, %v691
    %v693 = vpop.f32.mrb[0].mxu0
    %v694 = vpop.f32.mrb[0].mxu0
    %v695 = vadd.f32 %v608, %v694
    %v696 = vpop.f32.mrb[0].mxu0
    %697 = vmatprep.mubr.bf16.mxu0 0
    %698 = vmatmul.mubr.bf16.gmra.mrb[0].mxu0 %v587
    %v699 = vpop.f32.mrb[0].mxu0
    %v700 = vadd.f32 %v608, %v699
    %v701 = vpop.f32.mrb[0].mxu0
    %v702 = vpop.f32.mrb[0].mxu0
    %v703 = vadd.f32 %v608, %v702
    %v704 = vpop.f32.mrb[0].mxu0
    %705 = vdwg.mxu0
    %v706 = vadd.f32 %v458, %v692
    %v707 = vadd.f32 %v459, %v695
    %v708 = vadd.f32 %v460, %v700
    %v709 = vadd.f32 %v461, %v703
    %v710 = vpack.c.bf16 %v707, %v706
    %v711 = vpack.c.bf16 %v709, %v708
    %v712 = vld [vmem:[#allocation8] sm:$0xf]
    %v713 = vld [vmem:[#allocation8 + $0x4] sm:$0xf]
    %v714 = vld [vmem:[#allocation8 + $0x8] sm:$0xf]
    %v715 = vld [vmem:[#allocation8 + $0xc] sm:$0xf]
    %v716 = vld [vmem:[#allocation8 + $0x10] sm:$0xf]
    %v717 = vld [vmem:[#allocation8 + $0x14] sm:$0xf]
    %v718 = vld [vmem:[#allocation8 + $0x18] sm:$0xf]
    %v719 = vld [vmem:[#allocation8 + $0x1c] sm:$0xf]
    %v720 = vld [vmem:[#allocation8 + $0x20] sm:$0xf]
    %v721 = vld [vmem:[#allocation8 + $0x24] sm:$0xf]
    %v722 = vld [vmem:[#allocation8 + $0x28] sm:$0xf]
    %v723 = vld [vmem:[#allocation8 + $0x2c] sm:$0xf]
    %v724 = vld [vmem:[#allocation8 + $0x30] sm:$0xf]
    %v725 = vld [vmem:[#allocation8 + $0x34] sm:$0xf]
    %v726 = vld [vmem:[#allocation8 + $0x38] sm:$0xf]
    %v727 = vld [vmem:[#allocation8 + $0x3c] sm:$0xf]
    %v728 = vlaneseq
    %v729 = vshrl.u32 %v728, 7
    %v730 = vsub.s32 5, %v729
    %v731 = vrot.slane %v77, %v730
    %v748 = vunpack.c.l.b16 %v712
    %v749 = vunpack.c.l.b16 %v713
    %v750 = vunpack.c.l.b16 %v714
    %v751 = vunpack.c.l.b16 %v715
    %v752 = vunpack.c.l.b16 %v716
    %v753 = vunpack.c.l.b16 %v717
    %v754 = vunpack.c.l.b16 %v718
    %v755 = vunpack.c.l.b16 %v719
    %v756 = vunpack.c.l.b16 %v720
    %v757 = vunpack.c.l.b16 %v721
    %v758 = vunpack.c.l.b16 %v722
    %v759 = vunpack.c.l.b16 %v723
    %v760 = vunpack.c.l.b16 %v724
    %v761 = vunpack.c.l.b16 %v725
    %v762 = vunpack.c.l.b16 %v726
    %v763 = vunpack.c.l.b16 %v727
    %v764 = vpack.c.b16 %v749, %v748
    %v765 = vpack.c.b16 %v751, %v750
    %v766 = vpack.c.b16 %v753, %v752
    %v767 = vpack.c.b16 %v755, %v754
    %v768 = vpack.c.b16 %v757, %v756
    %v769 = vpack.c.b16 %v759, %v758
    %v770 = vpack.c.b16 %v761, %v760
    %v771 = vpack.c.b16 %v763, %v762
    %780 = vmatprep.subr.bf16.mxu0 0
    %781 = vmatpush1.bf16.msra.mxu0 %v764
    %782 = vmatprep.subr.bf16.mxu0 0
    %783 = vmatpush1.bf16.msra.mxu0 %v765
    %784 = vmatprep.subr.bf16.mxu0 0
    %785 = vmatpush1.bf16.msra.mxu0 %v766
    %786 = vmatprep.subr.bf16.mxu0 0
    %787 = vmatpush1.bf16.msra.mxu0 %v767
    %788 = vmatprep.subr.bf16.mxu0 0
    %789 = vmatpush1.bf16.msra.mxu0 %v768
    %790 = vmatprep.subr.bf16.mxu0 0
    %791 = vmatpush1.bf16.msra.mxu0 %v769
    %792 = vmatprep.subr.bf16.mxu0 0
    %793 = vmatpush1.bf16.msra.mxu0 %v770
    %794 = vmatprep.subr.bf16.mxu0 0
    %795 = vmatpush1.bf16.msra.mxu0 %v771
    %796 = vmatprep.subr.bf16.mxu0 0
    %797 = vmatpush1.bf16.msra.mxu0 0
    %798 = vmatprep.subr.bf16.mxu0 0
    %799 = vmatpush1.bf16.msra.mxu0 0
    %800 = vmatprep.subr.bf16.mxu0 0
    %801 = vmatpush1.bf16.msra.mxu0 0
    %802 = vmatprep.subr.bf16.mxu0 0
    %803 = vmatpush1.bf16.msra.mxu0 0
    %804 = vmatprep.subr.bf16.mxu0 0
    %805 = vmatpush1.bf16.msra.mxu0 0
    %806 = vmatprep.subr.bf16.mxu0 0
    %807 = vmatpush1.bf16.msra.mxu0 0
    %808 = vmatprep.subr.bf16.mxu0 0
    %809 = vmatpush1.bf16.msra.mxu0 0
    %810 = vmatprep.subr.bf16.mxu0 0
    %811 = vmatpush1.bf16.msra.mxu0 0
    %812 = vmatprep.mubr.bf16.mxu0 0
    %813 = vmatmul.mubr.bf16.gmra.mrb[0].mxu0 %v710
    %v814 = vpop.f32.mrb[0].mxu0
    %v815 = vadd.f32 %v731, %v814
    %v816 = vpop.f32.mrb[0].mxu0
    %v817 = vpop.f32.mrb[0].mxu0
    %v818 = vadd.f32 %v731, %v817
    %v819 = vpop.f32.mrb[0].mxu0
    %820 = vmatprep.mubr.bf16.mxu0 0
    %821 = vmatmul.mubr.bf16.gmra.mrb[0].mxu0 %v711
    %v822 = vpop.f32.mrb[0].mxu0
    %v823 = vadd.f32 %v731, %v822
    %v824 = vpop.f32.mrb[0].mxu0
    %v825 = vpop.f32.mrb[0].mxu0
    %v826 = vadd.f32 %v731, %v825
    %v827 = vpop.f32.mrb[0].mxu0
    %828 = vdwg.mxu0
    %829 = vst [vmem:[#allocation10] sm:$0xff] %v815
    %830 = vst [vmem:[#allocation10 + $0x8] sm:$0xff] %v818
    %831 = vst [vmem:[#allocation10 + $0x10] sm:$0xff] %v823
    %832 = vst [vmem:[#allocation10 + $0x18] sm:$0xff] %v826
    // Predicated region
    $region38: #{tpu_custom_call.1} parent=1 // pred_check
      _
    $region39: #{tpu_custom_call.1} parent=1 // pred_check_branch
      %834 = sbr.rel (0) target = $region41
    $region40: #{tpu_custom_call.1} parent=1 // pred_region
      %s836 = ssub.s32 512, 512
      %837 = vsyncadd [#allocation4], %s836
      %s838 = sshll.u32 [#allocation10], 4
      %s839 = int_to_ptr.vmem [resolvable:$true] %s838
      %844 = dma.vmem_to_hbm [thread:$0]  %s839, 512, %s5, [#allocation4], 128, 128, 8
    $region41: #{tpu_custom_call.1} parent=1 // pred_fallthru
      _
    // Predicated region
    $region42: #{tpu_custom_call.1} parent=1 // pred_check
      _
    $region43: #{tpu_custom_call.1} parent=1 // pred_check_branch
      %846 = sbr.rel (0) target = $region45
    $region44: #{tpu_custom_call.1} parent=1 // pred_region
      %847 = dma.done [#allocation4], 512
    $region45: #{tpu_custom_call.1} parent=1 // pred_fallthru
      _
    %848 = vsyncpa [#allocation3], 1
    %849 = vsyncpa [#allocation6], 1
    %850 = vsyncpa [#allocation9], 1
    %851 = vsyncpa [#allocation4], 1

</llo_original>
